<compile_context>
chip_gen: v7x
topology: tpu7x:2x2x1
jax: 0.10.0
libtpu: 0.0.40
codegen_flags: <defaults>
</compile_context>

<pallas_src>
import math
from functools import partial

import jax
import jax.numpy as jnp
from jax.experimental import pallas as pl
from jax.experimental.pallas import tpu as pltpu


_SQRT_HALF = 0.7071067811865476
_SQRT_2_OVER_PI = 0.7978845608028654


def _gelu_erf(x):
    # PyTorch F.gelu default = exact erf-based GELU (parity path, f32).
    return 0.5 * x * (1.0 + jax.lax.erf(x * _SQRT_HALF))


def _gelu_tanh(x):
    # tanh-approx GELU (== F.gelu(approximate='tanh')); tanh lands on the EUP
    # slot instead of ~20+ VALU ops/element, and runs in the compute dtype.
    return 0.5 * x * (1.0 + jnp.tanh(_SQRT_2_OVER_PI * (x + 0.044715 * (x * x * x))))


def mlp_kernel(x_ref, w1_ref, b1_ref, w2_ref, b2_ref, o_ref, acc_ref,
               *, n_chunks, dc, exact_gelu):
    # x_ref:  (tile_m, H)  streamed token tile (cast to compute dtype here)
    # w1_ref: (H, D)       VMEM-resident fc1 weight (single-buffered)
    # b1_ref: (1, D)  f32  VMEM-resident
    # w2_ref: (D, H)       VMEM-resident fc2 weight (single-buffered)
    # b2_ref: (1, H)  f32  VMEM-resident
    # acc_ref:(tile_m, H)  f32 accumulator scratch
    x = x_ref[...].astype(w1_ref.dtype)

    def fused_chunk(w1_c, b1_c, w2_c):
        # fc1 chunk on the MXU, f32 accumulation + f32 bias add.
        h = jnp.dot(x, w1_c, preferred_element_type=jnp.float32) + b1_c
        if exact_gelu:
            h = _gelu_erf(h)                       # exact erf in f32 (parity)
        else:
            h = _gelu_tanh(h.astype(w2_c.dtype))   # tanh-approx in compute dtype
        # Dropout is identity in eval mode.
        # TODO(synk): training-mode dropout could use pltpu.prng_seed + pltpu.stateful_bernoulli.
        return jnp.dot(h.astype(w2_c.dtype), w2_c,
                       preferred_element_type=jnp.float32)

    if n_chunks == 1:
        acc = fused_chunk(w1_ref[...], b1_ref[...], w2_ref[...])
        o_ref[...] = (acc + b2_ref[...]).astype(o_ref.dtype)
    else:
        acc_ref[...] = jnp.zeros_like(acc_ref)

        def body(c, carry):
            off = pl.multiple_of(c * dc, dc)       # dc is a multiple of 128 here
            acc_ref[...] += fused_chunk(w1_ref[:, pl.ds(off, dc)],
                                        b1_ref[:, pl.ds(off, dc)],
                                        w2_ref[pl.ds(off, dc), :])
            return carry

        jax.lax.fori_loop(0, n_chunks, body, 0, unroll=True)
        o_ref[...] = (acc_ref[...] + b2_ref[...]).astype(o_ref.dtype)


def _pick_tile_m(M):
    # Largest MXU-saturating tile that still gives >= 2 grid steps
    # (so ("parallel",) actually splits work across v7x's two TensorCores).
    for t in (512, 256, 128, 64, 32, 16, 8):
        if M >= 2 * t:
            return t
    return 8


def _pick_d_chunk(D, d_chunk):
    # Largest lane-aligned chunk <= d_chunk that divides D; else whole D (1 chunk).
    for dc in (d_chunk, 512, 384, 256, 128):
        if dc <= D and D % dc == 0 and dc % 128 == 0:
            return dc
    return D


def _vmem_limit_bytes(tile_m, H, D, dc, compute_dtype, x_dtype, out_dtype):
    w_bpe = jnp.dtype(compute_dtype).itemsize
    x_bpe = jnp.dtype(x_dtype).itemsize
    o_bpe = jnp.dtype(out_dtype).itemsize
    budget = (
        2 * H * D * w_bpe              # fc1 + fc2 weights, single-buffered residents
        + (D + H) * 4                  # f32 biases, resident
        + 2 * tile_m * H * x_bpe       # double-buffered streaming x tiles
        + 2 * tile_m * H * o_bpe       # double-buffered streaming out tiles
        + tile_m * H * 4               # f32 accumulator scratch
        + tile_m * dc * (4 + w_bpe)    # f32 h chunk + compute-dtype activation copy
        + (4 << 20)                    # compiler headroom
    )
    try:
        phys = int(pltpu.get_tpu_info().vmem_capacity_bytes)
    except Exception:
        phys = 64 << 20                # conservative fallback (v7x per-TC VMEM)
    cap = phys - (8 << 20)             # leave Mosaic internal-scratch headroom
    return int(min(max(budget, 32 << 20), cap))


def mlp_pallas(x, w1, b1, w2, b2, *, tile_m=None, d_chunk=512,
               compute_dtype=jnp.bfloat16, gelu=None, out_dtype=None):
    """x: (B, N, hidden) -> (B, N, hidden).

    Weights stay resident (single-buffered) in VMEM; the flattened token matrix
    is row-tiled.  Matmuls run in `compute_dtype` (bf16 default) with f32
    accumulation.  gelu: "tanh" (fast, EUP) or "erf" (exact parity); default is
    tanh for bf16, erf for f32.
    """
    B, N, H = x.shape
    M = B * N
    D = w1.shape[1]

    out_dtype = x.dtype if out_dtype is None else out_dtype
    if gelu is None:
        gelu = "erf" if jnp.dtype(compute_dtype) == jnp.dtype(jnp.float32) else "tanh"
    if tile_m is None:
        tile_m = _pick_tile_m(M)
    dc = _pick_d_chunk(D, d_chunk)
    n_chunks = D // dc

    # No host-side pad/cast pass: reshape is free, x is cast inside the kernel,
    # ragged last row-block is masked by Pallas.
    x2d = x.reshape(M, H)
    w1c = w1.astype(compute_dtype)
    w2c = w2.astype(compute_dtype)
    b1_2d = b1.reshape(1, D).astype(jnp.float32)
    b2_2d = b2.reshape(1, H).astype(jnp.float32)

    grid = (pl.cdiv(M, tile_m),)
    vmem_bytes = _vmem_limit_bytes(tile_m, H, D, dc, compute_dtype, x.dtype, out_dtype)

    # Whole-array VMEM residents: no pipeline buffers, one copy in VMEM
    # (the single-buffering the review asked for, with a stronger guarantee).
    def resident():
        return pl.BlockSpec(memory_space=pltpu.MemorySpace.VMEM)

    kernel = partial(mlp_kernel, n_chunks=n_chunks, dc=dc,
                     exact_gelu=(gelu == "erf"))

    out2d = pl.pallas_call(
        kernel,
        out_shape=jax.ShapeDtypeStruct((M, H), out_dtype),
        grid_spec=pltpu.PrefetchScalarGridSpec(
            num_scalar_prefetch=0,
            grid=grid,
            in_specs=[
                pl.BlockSpec((tile_m, H), lambda i: (i, 0)),   # streamed x tiles
                resident(),                                    # w1
                resident(),                                    # b1
                resident(),                                    # w2
                resident(),                                    # b2
            ],
            out_specs=pl.BlockSpec((tile_m, H), lambda i: (i, 0)),
            scratch_shapes=[pltpu.VMEM((tile_m, H), jnp.float32)],
        ),
        compiler_params=pltpu.CompilerParams(
            dimension_semantics=("parallel",),
            vmem_limit_bytes=vmem_bytes),
    )(x2d, w1c, b1_2d, w2c, b2_2d)

    return out2d.reshape(B, N, H)


def init_mlp_params(key, hidden_size, mlp_dim, dtype=jnp.float32):
    """Deterministic init matching Mlp._init_weights (xavier_uniform + tiny normal bias)."""
    k1, k2, k3, k4 = jax.random.split(key, 4)

    def xavier_uniform(k, fan_in, fan_out):
        limit = math.sqrt(6.0 / (fan_in + fan_out))
        return jax.random.uniform(k, (fan_in, fan_out), dtype, -limit, limit)

    w1 = xavier_uniform(k1, hidden_size, mlp_dim)   # fc1.weight.T (applied as x @ w1)
    b1 = (1e-6 * jax.random.normal(k2, (mlp_dim,))).astype(dtype)
    w2 = xavier_uniform(k3, mlp_dim, hidden_size)   # fc2.weight.T
    b2 = (1e-6 * jax.random.normal(k4, (hidden_size,))).astype(dtype)
    return w1, b1, w2, b2


if __name__ == "__main__":
    # Small shapes consistent with the module: batch=2, seq=8, hidden=32, mlp_dim=64
    B, N, hidden_size, mlp_dim = 2, 8, 32, 64

    key = jax.random.PRNGKey(0)
    kx, kp = jax.random.split(key)
    x = jax.random.normal(kx, (B, N, hidden_size), dtype=jnp.float32)
    w1, b1, w2, b2 = init_mlp_params(kp, hidden_size, mlp_dim)

    # Reference in plain f32 JAX (same math as the PyTorch module in eval mode).
    ref = _gelu_erf(x.reshape(-1, hidden_size) @ w1 + b1) @ w2 + b2
    ref = ref.reshape(B, N, hidden_size)

    # 1) Fast path (default): bf16 operands + bf16 tanh-approx GELU (EUP).
    #    Relaxed tolerance vs. the exact-erf f32 reference.
    out_bf16 = mlp_pallas(x, w1, b1, w2, b2, compute_dtype=jnp.bfloat16)
    jax.block_until_ready(out_bf16)
    assert jnp.allclose(out_bf16, ref, atol=5e-2, rtol=5e-2), "bf16 path mismatch vs reference"

    # 2) Parity path: f32 operands + exact erf GELU, tight tolerance.
    out_f32 = mlp_pallas(x, w1, b1, w2, b2, compute_dtype=jnp.float32)
    jax.block_until_ready(out_f32)
    assert jnp.allclose(out_f32, ref, atol=1e-5, rtol=1e-5), "f32 path mismatch vs reference"

    print("KERNEL_OK")
</pallas_src>

<mosaic_0001>
module attributes {stable_mosaic.version = 11 : i64} {
  func.func @mlp_kernel(%arg0: i32, %arg1: memref<8x32xf32, #tpu.memory_space<vmem>>, %arg2: memref<32x64xbf16, #tpu.memory_space<vmem>>, %arg3: memref<1x64xf32, #tpu.memory_space<vmem>>, %arg4: memref<64x32xbf16, #tpu.memory_space<vmem>>, %arg5: memref<1x32xf32, #tpu.memory_space<vmem>>, %arg6: memref<8x32xf32, #tpu.memory_space<vmem>>, %arg7: memref<8x32xf32, #tpu.memory_space<vmem>>) attributes {dimension_semantics = [#tpu.dimension_semantics<parallel>], iteration_bounds = array<i64: 2>, scalar_prefetch = 0 : i64, scratch_operands = 1 : i64, tpu.core_type = #tpu.core_type<tc>, window_params = [{transform_indices = @transform_0, window_bounds = array<i64: 8, 32>}, {pipeline_mode = #tpu.pipeline_mode<synchronous>, transform_indices = @transform_1, window_bounds = array<i64: 32, 64>}, {pipeline_mode = #tpu.pipeline_mode<synchronous>, transform_indices = @transform_2, window_bounds = array<i64: 1, 64>}, {pipeline_mode = #tpu.pipeline_mode<synchronous>, transform_indices = @transform_3, window_bounds = array<i64: 64, 32>}, {pipeline_mode = #tpu.pipeline_mode<synchronous>, transform_indices = @transform_4, window_bounds = array<i64: 1, 32>}, {transform_indices = @transform_5, window_bounds = array<i64: 8, 32>}]} {
    %c0 = arith.constant 0 : index
    %c0_0 = arith.constant 0 : index
    %0 = vector.load %arg1[%c0, %c0_0] : memref<8x32xf32, #tpu.memory_space<vmem>>, vector<8x32xf32>
    %1 = arith.truncf %0 : vector<8x32xf32> to vector<8x32xbf16>
    %c0_1 = arith.constant 0 : index
    %c0_2 = arith.constant 0 : index
    %2 = vector.load %arg2[%c0_1, %c0_2] : memref<32x64xbf16, #tpu.memory_space<vmem>>, vector<32x64xbf16>
    %c0_3 = arith.constant 0 : index
    %c0_4 = arith.constant 0 : index
    %3 = vector.load %arg3[%c0_3, %c0_4] : memref<1x64xf32, #tpu.memory_space<vmem>>, vector<1x64xf32>
    %c0_5 = arith.constant 0 : index
    %c0_6 = arith.constant 0 : index
    %4 = vector.load %arg4[%c0_5, %c0_6] : memref<64x32xbf16, #tpu.memory_space<vmem>>, vector<64x32xbf16>
    %cst = arith.constant dense<0.000000e+00> : vector<8x64xf32>
    %5 = tpu.matmul %1, %2, %cst {dimension_numbers = #tpu.dot_dimension_numbers<[1], [0], [0], [1], [0, 0, 1, 1], [], []>} : vector<8x32xbf16>, vector<32x64xbf16>, vector<8x64xf32> -> vector<8x64xf32>
    %6 = vector.broadcast %3 : vector<1x64xf32> to vector<8x64xf32>
    %7 = arith.addf %5, %6 : vector<8x64xf32>
    %8 = arith.truncf %7 : vector<8x64xf32> to vector<8x64xbf16>
    %cst_7 = arith.constant 5.000000e-01 : bf16
    %9 = vector.broadcast %cst_7 : bf16 to vector<8x64xbf16>
    %10 = arith.mulf %9, %8 : vector<8x64xbf16>
    %11 = arith.mulf %8, %8 : vector<8x64xbf16>
    %12 = arith.mulf %11, %8 : vector<8x64xbf16>
    %cst_8 = arith.constant 4.467770e-02 : bf16
    %13 = vector.broadcast %cst_8 : bf16 to vector<8x64xbf16>
    %14 = arith.mulf %13, %12 : vector<8x64xbf16>
    %15 = arith.addf %8, %14 : vector<8x64xbf16>
    %cst_9 = arith.constant 7.968750e-01 : bf16
    %16 = vector.broadcast %cst_9 : bf16 to vector<8x64xbf16>
    %17 = arith.mulf %16, %15 : vector<8x64xbf16>
    %18 = math.tanh %17 : vector<8x64xbf16>
    %cst_10 = arith.constant 1.000000e+00 : bf16
    %19 = vector.broadcast %cst_10 : bf16 to vector<8x64xbf16>
    %20 = arith.addf %19, %18 : vector<8x64xbf16>
    %21 = arith.mulf %10, %20 : vector<8x64xbf16>
    %cst_11 = arith.constant dense<0.000000e+00> : vector<8x32xf32>
    %22 = tpu.matmul %21, %4, %cst_11 {dimension_numbers = #tpu.dot_dimension_numbers<[1], [0], [0], [1], [0, 0, 1, 1], [], []>} : vector<8x64xbf16>, vector<64x32xbf16>, vector<8x32xf32> -> vector<8x32xf32>
    %c0_12 = arith.constant 0 : index
    %c0_13 = arith.constant 0 : index
    %23 = vector.load %arg5[%c0_12, %c0_13] : memref<1x32xf32, #tpu.memory_space<vmem>>, vector<1x32xf32>
    %24 = vector.broadcast %23 : vector<1x32xf32> to vector<8x32xf32>
    %25 = arith.addf %22, %24 : vector<8x32xf32>
    %c0_14 = arith.constant 0 : index
    %c0_15 = arith.constant 0 : index
    %26 = vector.load %arg6[%c0_14, %c0_15] : memref<8x32xf32, #tpu.memory_space<vmem>>, vector<8x32xf32>
    tpu.vector_store %arg6[%c0_14, %c0_15], %25 {strides = array<i32>} : memref<8x32xf32, #tpu.memory_space<vmem>>, vector<8x32xf32>,
    return
  }
  func.func @transform_0(%arg0: i32) -> (i32, i32) {
    %c0_i32 = arith.constant 0 : i32
    %c0_i32_0 = arith.constant 0 : i32
    return %arg0, %c0_i32 : i32, i32
  }
  func.func @transform_1(%arg0: i32) -> (i32, i32) {
    %c0_i32 = arith.constant 0 : i32
    %c0_i32_0 = arith.constant 0 : i32
    %c0_i32_1 = arith.constant 0 : i32
    return %c0_i32, %c0_i32_0 : i32, i32
  }
  func.func @transform_2(%arg0: i32) -> (i32, i32) {
    %c0_i32 = arith.constant 0 : i32
    %c0_i32_0 = arith.constant 0 : i32
    %c0_i32_1 = arith.constant 0 : i32
    return %c0_i32, %c0_i32_0 : i32, i32
  }
  func.func @transform_3(%arg0: i32) -> (i32, i32) {
    %c0_i32 = arith.constant 0 : i32
    %c0_i32_0 = arith.constant 0 : i32
    %c0_i32_1 = arith.constant 0 : i32
    return %c0_i32, %c0_i32_0 : i32, i32
  }
  func.func @transform_4(%arg0: i32) -> (i32, i32) {
    %c0_i32 = arith.constant 0 : i32
    %c0_i32_0 = arith.constant 0 : i32
    %c0_i32_1 = arith.constant 0 : i32
    return %c0_i32, %c0_i32_0 : i32, i32
  }
  func.func @transform_5(%arg0: i32) -> (i32, i32) {
    %c0_i32 = arith.constant 0 : i32
    %c0_i32_0 = arith.constant 0 : i32
    return %arg0, %c0_i32 : i32, i32
  }
}

</mosaic_0001>

<llo_original>
// kernel: tpu_custom_call.1
$region0: #{tpu_custom_call.1}
  #allocation0 [shape = 'u32[]', space=smem, size = 0x4, offset = 0x4, fixed_abs, tag = 'smem constant byte address 0x4 - core index']
  #allocation1 [shape = 'u32[144,128]{1,0:T(1,128)}', space=vmem, size = 0x12000, scoped, tag = 'internal scratch']
  #allocation2 [shape = 'f32[8,32]{1,0:T(8,128)}', space=vmem, size = 0x1000, scoped, tag = 'scratch operand']
  %s0 = inlined_call_operand.vmem [shape: f32[16,32], index: 0, kind: input, shape index: {}]
  %s1 = inlined_call_operand.vmem [shape: bf16[32,64], index: 1, kind: input, shape index: {}]
  %s2 = inlined_call_operand.vmem [shape: f32[1,64], index: 2, kind: input, shape index: {}]
  %s3 = inlined_call_operand.vmem [shape: bf16[64,32], index: 3, kind: input, shape index: {}]
  %s4 = inlined_call_operand.vmem [shape: f32[1,32], index: 4, kind: input, shape index: {}]
  %s5 = inlined_call_operand.hbm [shape: f32[16,32], index: 5, kind: output, shape index: {}]
  %s6 = sld [smem:[#allocation0]]
  $region53: #{tpu_custom_call.1} parent=0
    _
  %s8 = ssub.s32 1, %s6
  %s9 = scalar_select 0, %s8, %s6
  $region1: #{tpu_custom_call.1} parent=0
    #allocation3 [shape = 'u8[8192]{0}', space=vmem, size = 0x2000, scoped, tag = 'output window, operand 0']
    #allocation4 [shape = 's32[2]{0}', space=sflag, size = 0x8, scoped, tag = 'scoped memory for tpu_custom_call.1']
    %10 = vsyncpa [#allocation4], 0
    %s11 = scalar_lea.sflag [#allocation4], 1
    %12 = vsyncpa %s11, 0
    loop: start=0, step=1, limit=4
    $region2: #{tpu_custom_call.1} parent=1 // loop_pre_header
      _
    $region3: #{tpu_custom_call.1} parent=1 // loop_header
      %s14 = sphi 0, %s18
      %p15 = scmp.ge.s32.totalorder %s14, 4
      %s24 = sphi 0, %s26
      %s27 = sphi 0, %s24
      %s28 = sphi 0, %s27
      %s44 = sphi 0, %s28
      %s48 = sphi 0, %s48
      %s50 = sphi 0, %s48
      %s51 = sphi 0, %s50
      %s65 = sphi 0, %s51
      %s69 = sphi 0, %s69
      %s71 = sphi 0, %s69
      %s72 = sphi 0, %s71
      %s86 = sphi 0, %s72
      %s90 = sphi 0, %s90
      %s92 = sphi 0, %s90
      %s93 = sphi 0, %s92
      %s107 = sphi 0, %s93
      %s111 = sphi 0, %s111
      %s113 = sphi 0, %s111
      %s114 = sphi 0, %s113
      %s128 = sphi 0, %s114
      %s134 = sphi 0, %s136
      %s137 = sphi 0, %s134
      %s138 = sphi 0, %s137
      %s154 = sphi 0, %s138
    $region4: #{tpu_custom_call.1} parent=1 // loop_header_branch
      %17 = sbr.rel (%p15) target = $region8
    $region5: #{tpu_custom_call.1} parent=1 // loop_body
      %s19 = ssub.s32 %s14, 1
      %s20 = ssub.s32 %s14, 2
      %s21 = sadd.s32 %s14, 1
      %s22 = ssub.s32 %s14, %s21
      %p23 = scmp.eq.s32.totalorder %s22, 0
      %s25 = sadd.s32 %s24, 1
      %s26 = scalar_select %p23, %s24, %s25
      %p29 = pneg %p23
      %p30 = scmp.eq.s32.totalorder %s14, 1
      %p31 = por %p29, %p30
      %p32 = scmp.ne.s32.totalorder %s24, %s27
      %p33 = scmp.eq.s32.totalorder %s14, 0
      %p34 = por %p32, %p33
      %p35 = scmp.ne.s32.totalorder %s24, %s27
      %p36 = scmp.eq.s32.totalorder %s19, 1
      %p37 = por %p35, %p36
      %p38 = scmp.ne.s32.totalorder %s27, %s28
      %p39 = scmp.eq.s32.totalorder %s19, 0
      %p40 = por %p38, %p39
      %p41 = scmp.ne.s32.totalorder %s27, %s28
      %p42 = scmp.eq.s32.totalorder %s20, 1
      %p43 = por %p41, %p42
      %p45 = scmp.ne.s32.totalorder %s28, %s44
      %p46 = scmp.eq.s32.totalorder %s20, 0
      %p47 = por %p45, %p46
      %s49 = sadd.s32 %s48, 1
      %p52 = scmp.eq.s32.totalorder %s14, 1
      %p53 = scmp.ne.s32.totalorder %s48, %s50
      %p54 = scmp.eq.s32.totalorder %s14, 0
      %p55 = por %p53, %p54
      %p56 = scmp.ne.s32.totalorder %s48, %s50
      %p57 = scmp.eq.s32.totalorder %s19, 1
      %p58 = por %p56, %p57
      %p59 = scmp.ne.s32.totalorder %s50, %s51
      %p60 = scmp.eq.s32.totalorder %s19, 0
      %p61 = por %p59, %p60
      %p62 = scmp.ne.s32.totalorder %s50, %s51
      %p63 = scmp.eq.s32.totalorder %s20, 1
      %p64 = por %p62, %p63
      %p66 = scmp.ne.s32.totalorder %s51, %s65
      %p67 = scmp.eq.s32.totalorder %s20, 0
      %p68 = por %p66, %p67
      %s70 = sadd.s32 %s69, 1
      %p73 = scmp.eq.s32.totalorder %s14, 1
      %p74 = scmp.ne.s32.totalorder %s69, %s71
      %p75 = scmp.eq.s32.totalorder %s14, 0
      %p76 = por %p74, %p75
      %p77 = scmp.ne.s32.totalorder %s69, %s71
      %p78 = scmp.eq.s32.totalorder %s19, 1
      %p79 = por %p77, %p78
      %p80 = scmp.ne.s32.totalorder %s71, %s72
      %p81 = scmp.eq.s32.totalorder %s19, 0
      %p82 = por %p80, %p81
      %p83 = scmp.ne.s32.totalorder %s71, %s72
      %p84 = scmp.eq.s32.totalorder %s20, 1
      %p85 = por %p83, %p84
      %p87 = scmp.ne.s32.totalorder %s72, %s86
      %p88 = scmp.eq.s32.totalorder %s20, 0
      %p89 = por %p87, %p88
      %s91 = sadd.s32 %s90, 1
      %p94 = scmp.eq.s32.totalorder %s14, 1
      %p95 = scmp.ne.s32.totalorder %s90, %s92
      %p96 = scmp.eq.s32.totalorder %s14, 0
      %p97 = por %p95, %p96
      %p98 = scmp.ne.s32.totalorder %s90, %s92
      %p99 = scmp.eq.s32.totalorder %s19, 1
      %p100 = por %p98, %p99
      %p101 = scmp.ne.s32.totalorder %s92, %s93
      %p102 = scmp.eq.s32.totalorder %s19, 0
      %p103 = por %p101, %p102
      %p104 = scmp.ne.s32.totalorder %s92, %s93
      %p105 = scmp.eq.s32.totalorder %s20, 1
      %p106 = por %p104, %p105
      %p108 = scmp.ne.s32.totalorder %s93, %s107
      %p109 = scmp.eq.s32.totalorder %s20, 0
      %p110 = por %p108, %p109
      %s112 = sadd.s32 %s111, 1
      %p115 = scmp.eq.s32.totalorder %s14, 1
      %p116 = scmp.ne.s32.totalorder %s111, %s113
      %p117 = scmp.eq.s32.totalorder %s14, 0
      %p118 = por %p116, %p117
      %p119 = scmp.ne.s32.totalorder %s111, %s113
      %p120 = scmp.eq.s32.totalorder %s19, 1
      %p121 = por %p119, %p120
      %p122 = scmp.ne.s32.totalorder %s113, %s114
      %p123 = scmp.eq.s32.totalorder %s19, 0
      %p124 = por %p122, %p123
      %p125 = scmp.ne.s32.totalorder %s113, %s114
      %p126 = scmp.eq.s32.totalorder %s20, 1
      %p127 = por %p125, %p126
      %p129 = scmp.ne.s32.totalorder %s114, %s128
      %p130 = scmp.eq.s32.totalorder %s20, 0
      %p131 = por %p129, %p130
      %s132 = ssub.s32 %s14, %s21
      %p133 = scmp.eq.s32.totalorder %s132, 0
      %s135 = sadd.s32 %s134, 1
      %s136 = scalar_select %p133, %s134, %s135
      %p139 = pneg %p133
      %p140 = scmp.eq.s32.totalorder %s14, 1
      %p141 = por %p139, %p140
      %p142 = scmp.ne.s32.totalorder %s134, %s137
      %p143 = scmp.eq.s32.totalorder %s14, 0
      %p144 = por %p142, %p143
      %p145 = scmp.ne.s32.totalorder %s134, %s137
      %p146 = scmp.eq.s32.totalorder %s19, 1
      %p147 = por %p145, %p146
      %p148 = scmp.ne.s32.totalorder %s137, %s138
      %p149 = scmp.eq.s32.totalorder %s19, 0
      %p150 = por %p148, %p149
      %p151 = scmp.ne.s32.totalorder %s137, %s138
      %p152 = scmp.eq.s32.totalorder %s20, 1
      %p153 = por %p151, %p152
      %p155 = scmp.ne.s32.totalorder %s138, %s154
      %p156 = scmp.eq.s32.totalorder %s20, 0
      %p157 = por %p155, %p156
      %p158 = scmp.le.s32.totalorder 1, %s14
      %p159 = scmp.lt.s32.totalorder %s14, 3
      %p160 = pnand %p158, %p159
      %p161 = pneg %p160
      // Predicated region
      $region9: #{tpu_custom_call.1} parent=5 // pred_check
        _
      $region10: #{tpu_custom_call.1} parent=5 // pred_check_branch
        %163 = sbr.rel (%p160) target = $region12
      $region11: #{tpu_custom_call.1} parent=5 // pred_region
        %s164 = ssub.s32 %s14, 1
        // Predicated region
        $region13: #{tpu_custom_call.1} parent=11 // pred_check
          %p165 = pneg %p61
        $region14: #{tpu_custom_call.1} parent=11 // pred_check_branch
          %167 = sbr.rel (%p165) target = $region16
        $region15: #{tpu_custom_call.1} parent=11 // pred_region
          _
        $region16: #{tpu_custom_call.1} parent=11 // pred_fallthru
          _
        // Predicated region
        $region17: #{tpu_custom_call.1} parent=11 // pred_check
          %p168 = pneg %p82
        $region18: #{tpu_custom_call.1} parent=11 // pred_check_branch
          %170 = sbr.rel (%p168) target = $region20
        $region19: #{tpu_custom_call.1} parent=11 // pred_region
          _
        $region20: #{tpu_custom_call.1} parent=11 // pred_fallthru
          _
        // Predicated region
        $region21: #{tpu_custom_call.1} parent=11 // pred_check
          %p171 = pneg %p103
        $region22: #{tpu_custom_call.1} parent=11 // pred_check_branch
          %173 = sbr.rel (%p171) target = $region24
        $region23: #{tpu_custom_call.1} parent=11 // pred_region
          _
        $region24: #{tpu_custom_call.1} parent=11 // pred_fallthru
          _
        // Predicated region
        $region25: #{tpu_custom_call.1} parent=11 // pred_check
          %p174 = pneg %p124
        $region26: #{tpu_custom_call.1} parent=11 // pred_check_branch
          %176 = sbr.rel (%p174) target = $region28
        $region27: #{tpu_custom_call.1} parent=11 // pred_region
          _
        $region28: #{tpu_custom_call.1} parent=11 // pred_fallthru
          _
      $region12: #{tpu_custom_call.1} parent=5 // pred_fallthru
        _
      %p177 = scmp.lt.s32.totalorder %s14, 2
      // Predicated region
      $region29: #{tpu_custom_call.1} parent=5 // pred_check
        %p178 = pneg %p177
      $region30: #{tpu_custom_call.1} parent=5 // pred_check_branch
        %180 = sbr.rel (%p178) target = $region32
      $region31: #{tpu_custom_call.1} parent=5 // pred_region
        // Predicated region
        $region33: #{tpu_custom_call.1} parent=31 // pred_check
          %p181 = pneg %p34
        $region34: #{tpu_custom_call.1} parent=31 // pred_check_branch
          %183 = sbr.rel (%p181) target = $region36
        $region35: #{tpu_custom_call.1} parent=31 // pred_region
          %p184 = scmp.lt.s32.totalorder %s14, 1
          %s185 = scalar_select %p184, %s14, 1
          %s186 = smul.addr %s185, 8
          %s187 = scalar_lea.vmem %s0, %s186
        $region36: #{tpu_custom_call.1} parent=31 // pred_fallthru
          _
      $region32: #{tpu_custom_call.1} parent=5 // pred_fallthru
        _
      %p188 = scmp.le.s32.totalorder 1, %s14
      %p189 = scmp.lt.s32.totalorder %s14, 3
      %p190 = pnand %p188, %p189
      %p191 = pneg %p190
      // Predicated region
      $region37: #{tpu_custom_call.1} parent=5 // pred_check
        _
      $region38: #{tpu_custom_call.1} parent=5 // pred_check_branch
        %193 = sbr.rel (%p190) target = $region40
      $region39: #{tpu_custom_call.1} parent=5 // pred_region
        %s194 = ssub.s32 %s14, 1
        %p195 = scmp.lt.s32.totalorder %s19, 1
        %s196 = scalar_select %p195, %s19, 1
        %s197 = smul.addr %s196, 8
        %s198 = scalar_lea.vmem %s0, %s197
        %p199 = pneg %p40
        %p200 = pneg %p37
        %p201 = pneg %p61
        %p202 = pneg %p58
        %p203 = pneg %p82
        %p204 = pneg %p79
        %p205 = pneg %p103
        %p206 = pneg %p100
        %p207 = pneg %p124
        %p208 = pneg %p121
        %p209 = pneg %p150
        %p210 = pneg %p147
        %s211 = sand.u32 %s137, 1
        %s212 = scalar_lea.sflag [#allocation4], %s211
        %s213 = sand.u32 %s137, 1
        %s214 = smul.addr %s213, 8
        %s215 = scalar_lea.vmem [#allocation3], %s214
        %p216 = scmp.lt.s32.totalorder %s19, 1
        %s217 = scalar_select %p216, %s19, 1
        %s218 = smul.addr %s217, 8
        %s219 = scalar_lea.vmem %s0, %s218
        %v225 = vld [vmem:[%s219] sm:$0xff]
        %v226 = vpack.c.bf16 %v225, %v225
        %v227 = vld [vmem:[%s1] sm:$0xf]
        %v228 = vld [vmem:[%s1 + $0x4] sm:$0xf]
        %v229 = vld [vmem:[%s1 + $0x8] sm:$0xf]
        %v230 = vld [vmem:[%s1 + $0xc] sm:$0xf]
        %v231 = vld [vmem:[%s2] sm:$0x1]
        %v232 = vld [vmem:[%s3] sm:$0xf]
        %v233 = vld [vmem:[%s3 + $0x4] sm:$0xf]
        %v234 = vld [vmem:[%s3 + $0x8] sm:$0xf]
        %v235 = vld [vmem:[%s3 + $0xc] sm:$0xf]
        %v236 = vld [vmem:[%s3 + $0x10] sm:$0xf]
        %v237 = vld [vmem:[%s3 + $0x14] sm:$0xf]
        %v238 = vld [vmem:[%s3 + $0x18] sm:$0xf]
        %v239 = vld [vmem:[%s3 + $0x1c] sm:$0xf]
        %v241 = vlaneseq
        %v242 = vshrl.u32 %v241, 7
        %v243 = vsub.s32 0, %v242
        %v244 = vrot.slane %v231, %v243
        %v250 = vunpack.c.l.b16 %v227
        %v251 = vunpack.c.l.b16 %v228
        %v252 = vunpack.c.l.b16 %v229
        %v253 = vunpack.c.l.b16 %v230
        %v254 = vpack.c.b16 %v251, %v250
        %v255 = vpack.c.b16 %v253, %v252
        %vm258 = vcmask 261120
        %v260 = vsel %vm258, %v226, 0
        %262 = vmatprep.subr.bf16.mxu0 0
        %263 = vmatpush1.bf16.msra.mxu0 %v254
        %264 = vmatprep.subr.bf16.mxu0 0
        %265 = vmatpush1.bf16.msra.mxu0 %v255
        %266 = vmatprep.subr.bf16.mxu0 0
        %267 = vmatpush1.bf16.msra.mxu0 0
        %268 = vmatprep.subr.bf16.mxu0 0
        %269 = vmatpush1.bf16.msra.mxu0 0
        %270 = vmatprep.subr.bf16.mxu0 0
        %271 = vmatpush1.bf16.msra.mxu0 0
        %272 = vmatprep.subr.bf16.mxu0 0
        %273 = vmatpush1.bf16.msra.mxu0 0
        %274 = vmatprep.subr.bf16.mxu0 0
        %275 = vmatpush1.bf16.msra.mxu0 0
        %276 = vmatprep.subr.bf16.mxu0 0
        %277 = vmatpush1.bf16.msra.mxu0 0
        %278 = vmatprep.subr.bf16.mxu0 0
        %279 = vmatpush1.bf16.msra.mxu0 0
        %280 = vmatprep.subr.bf16.mxu0 0
        %281 = vmatpush1.bf16.msra.mxu0 0
        %282 = vmatprep.subr.bf16.mxu0 0
        %283 = vmatpush1.bf16.msra.mxu0 0
        %284 = vmatprep.subr.bf16.mxu0 0
        %285 = vmatpush1.bf16.msra.mxu0 0
        %286 = vmatprep.subr.bf16.mxu0 0
        %287 = vmatpush1.bf16.msra.mxu0 0
        %288 = vmatprep.subr.bf16.mxu0 0
        %289 = vmatpush1.bf16.msra.mxu0 0
        %290 = vmatprep.subr.bf16.mxu0 0
        %291 = vmatpush1.bf16.msra.mxu0 0
        %292 = vmatprep.subr.bf16.mxu0 0
        %293 = vmatpush1.bf16.msra.mxu0 0
        %294 = vmatprep.mubr.bf16.mxu0 0
        %295 = vmatmul.mubr.bf16.gmra.mrb[0].mxu0 %v260
        %v296 = vpop.f32.mrb[0].mxu0
        %v297 = vadd.f32 %v244, %v296
        %v298 = vpop.f32.mrb[0].mxu0
        %v299 = vpop.f32.mrb[0].mxu0
        %v300 = vpop.f32.mrb[0].mxu0
        %301 = vdwg.mxu0
        %v302 = vpack.c.bf16 %v297, %v297
        %v303 = vmul.bf16 %v302, 1056980736
        %v304 = vmul.bf16 %v302, %v302
        %v305 = vmul.bf16 %v304, %v302
        %v306 = vmul.bf16 %v305, 1027030327
        %v307 = vadd.bf16 %v302, %v306
        %v308 = vmul.bf16 %v307, 1061961548
        %v309 = vtanh.bf16.pop %v308
        %v310 = vadd.bf16 %v309, 1065369472
        %v311 = vmul.bf16 %v303, %v310
        %v312 = vld [vmem:[%s4] sm:$0x1]
        %v314 = vlaneseq
        %v315 = vshrl.u32 %v314, 7
        %v316 = vsub.s32 0, %v315
        %v317 = vrot.slane %v312, %v316
        %v327 = vunpack.c.l.b16 %v232
        %v328 = vunpack.c.l.b16 %v233
        %v329 = vunpack.c.l.b16 %v234
        %v330 = vunpack.c.l.b16 %v235
        %v331 = vunpack.c.l.b16 %v236
        %v332 = vunpack.c.l.b16 %v237
        %v333 = vunpack.c.l.b16 %v238
        %v334 = vunpack.c.l.b16 %v239
        %v335 = vpack.c.b16 %v328, %v327
        %v336 = vpack.c.b16 %v330, %v329
        %v337 = vpack.c.b16 %v332, %v331
        %v338 = vpack.c.b16 %v334, %v333
        %vm343 = vcmask 523264
        %v345 = vsel %vm343, %v311, 0
        %347 = vmatprep.subr.bf16.mxu0 0
        %348 = vmatpush1.bf16.msra.mxu0 %v335
        %349 = vmatprep.subr.bf16.mxu0 0
        %350 = vmatpush1.bf16.msra.mxu0 %v336
        %351 = vmatprep.subr.bf16.mxu0 0
        %352 = vmatpush1.bf16.msra.mxu0 %v337
        %353 = vmatprep.subr.bf16.mxu0 0
        %354 = vmatpush1.bf16.msra.mxu0 %v338
        %355 = vmatprep.subr.bf16.mxu0 0
        %356 = vmatpush1.bf16.msra.mxu0 0
        %357 = vmatprep.subr.bf16.mxu0 0
        %358 = vmatpush1.bf16.msra.mxu0 0
        %359 = vmatprep.subr.bf16.mxu0 0
        %360 = vmatpush1.bf16.msra.mxu0 0
        %361 = vmatprep.subr.bf16.mxu0 0
        %362 = vmatpush1.bf16.msra.mxu0 0
        %363 = vmatprep.subr.bf16.mxu0 0
        %364 = vmatpush1.bf16.msra.mxu0 0
        %365 = vmatprep.subr.bf16.mxu0 0
        %366 = vmatpush1.bf16.msra.mxu0 0
        %367 = vmatprep.subr.bf16.mxu0 0
        %368 = vmatpush1.bf16.msra.mxu0 0
        %369 = vmatprep.subr.bf16.mxu0 0
        %370 = vmatpush1.bf16.msra.mxu0 0
        %371 = vmatprep.subr.bf16.mxu0 0
        %372 = vmatpush1.bf16.msra.mxu0 0
        %373 = vmatprep.subr.bf16.mxu0 0
        %374 = vmatpush1.bf16.msra.mxu0 0
        %375 = vmatprep.subr.bf16.mxu0 0
        %376 = vmatpush1.bf16.msra.mxu0 0
        %377 = vmatprep.subr.bf16.mxu0 0
        %378 = vmatpush1.bf16.msra.mxu0 0
        %379 = vmatprep.mubr.bf16.mxu0 0
        %380 = vmatmul.mubr.bf16.gmra.mrb[0].mxu0 %v345
        %v381 = vpop.f32.mrb[0].mxu0
        %v382 = vadd.f32 %v317, %v381
        %v383 = vpop.f32.mrb[0].mxu0
        %v384 = vpop.f32.mrb[0].mxu0
        %v385 = vpop.f32.mrb[0].mxu0
        %386 = vdwg.mxu0
        %387 = vst.msk [vmem:[%s215] sm:$0xff] %vm258, %v382
        %s388 = sand.u32 %s137, 1
        %s389 = scalar_lea.sflag [#allocation4], %s388
        %s390 = sand.u32 %s137, 1
        %s391 = smul.addr %s390, 8
        %s392 = scalar_lea.vmem [#allocation3], %s391
        // Predicated region
        $region41: #{tpu_custom_call.1} parent=39 // pred_check
          %p393 = pneg %p147
        $region42: #{tpu_custom_call.1} parent=39 // pred_check_branch
          %395 = sbr.rel (%p393) target = $region44
        $region43: #{tpu_custom_call.1} parent=39 // pred_region
          %s397 = ssub.s32 128, 128
          %398 = vsyncadd %s389, %s397
          %s399 = smul.addr %s19, 128
          %s400 = scalar_lea.hbm %s5, %s399
          %s402 = sshll.u32 %s392, 4
          %s403 = int_to_ptr.vmem [resolvable:$true] %s402
          %405 = dma.vmem_to_hbm [thread:$0]  %s403, 128, %s400, %s389
        $region44: #{tpu_custom_call.1} parent=39 // pred_fallthru
          _
      $region40: #{tpu_custom_call.1} parent=5 // pred_fallthru
        _
      %p406 = scmp.le.s32.totalorder 2, %s14
      // Predicated region
      $region45: #{tpu_custom_call.1} parent=5 // pred_check
        %p407 = pneg %p406
      $region46: #{tpu_custom_call.1} parent=5 // pred_check_branch
        %409 = sbr.rel (%p407) target = $region48
      $region47: #{tpu_custom_call.1} parent=5 // pred_region
        %s410 = ssub.s32 %s14, 2
        // Predicated region
        $region49: #{tpu_custom_call.1} parent=47 // pred_check
          %p411 = pneg %p153
        $region50: #{tpu_custom_call.1} parent=47 // pred_check_branch
          %413 = sbr.rel (%p411) target = $region52
        $region51: #{tpu_custom_call.1} parent=47 // pred_region
          %s414 = sand.u32 %s138, 1
          %s415 = scalar_lea.sflag [#allocation4], %s414
          %s416 = sand.u32 %s138, 1
          %s417 = smul.addr %s416, 8
          %s418 = scalar_lea.vmem [#allocation3], %s417
          %419 = dma.done %s415, 128
        $region52: #{tpu_custom_call.1} parent=47 // pred_fallthru
          _
      $region48: #{tpu_custom_call.1} parent=5 // pred_fallthru
        _
    $region6: #{tpu_custom_call.1} parent=1 // loop_footer
      %s18 = sadd.s32 1, %s14
    $region7: #{tpu_custom_call.1} parent=1 // loop_footer_branch
      %13 = sbr.rel target = $region3
    $region8: #{tpu_custom_call.1} parent=1 // loop_exit
      _
    %420 = vsyncpa [#allocation4], 1
    %s421 = scalar_lea.sflag [#allocation4], 1
    %422 = vsyncpa %s421, 1

</llo_original>
